<compile_context>
chip_gen: v5e
topology: v5e:2x2
jax: 0.10.0
libtpu: 0.0.40
codegen_flags: <defaults>
</compile_context>

<pallas_src>
import jax
import jax.numpy as jnp
from jax.experimental import pallas as pl
from jax.experimental.pallas import tpu as pltpu


def _round_up(x, m):
    return (x + m - 1) // m * m


CSUM_TILE = 256  # chunk-axis tile at real scale (multiple of 128)


# ----------------------------------------------------------------------------
# Pallas kernel: classifier head, gridded over the chunk (Csum) axis.
# ----------------------------------------------------------------------------
def acu_head_kernel(step_ref, cls_ref, wp_ref, w1_ref, w2_ref, sp_ref,
                    out_ref, acc_ref, cnt_ref):
    k = pl.program_id(0)
    B = out_ref.shape[0]          # padded batch (sublane multiple)
    tc = cls_ref.shape[0]         # chunk-axis tile
    H = wp_ref.shape[1]           # bert hidden size
    M2 = w1_ref.shape[1]          # 2 * intermediate_mlp_size
    M = w2_ref.shape[1]           # intermediate_mlp_size

    @pl.when(k == 0)
    def _():
        acc_ref[...] = jnp.zeros_like(acc_ref)
        cnt_ref[...] = jnp.zeros_like(cnt_ref)

    # ---- BertModel pooler on this Csum tile: tanh(dense(CLS)) ---- [tc, H]
    # bf16 MXU operands, f32 accumulation; elementwise kept in f32 (v5e-safe).
    bp = sp_ref[0:1, :H]                                              # [1, H]
    pooled_chunks = jnp.tanh(
        jnp.dot(cls_ref[...], wp_ref[...],
                preferred_element_type=jnp.float32) + bp)             # [tc, H] f32

    # ---- scatter_mean partial sums over this tile -----------------
    # One-hot assignment built on the fly from step_chunks (-1 padding matches
    # no note).  One-hot is exact in bf16 -> both matmul operands bf16.
    step = step_ref[...]                                              # [1, tc] int32
    row_ids = jax.lax.broadcasted_iota(jnp.int32, (B, tc), 0)         # [B, tc]
    onehot = (step == row_ids)                                        # [B, tc] bool
    cnt_ref[...] += jnp.sum(onehot.astype(jnp.float32), axis=-1, keepdims=True)
    acc_ref[...] += jnp.dot(onehot.astype(jnp.bfloat16),
                            pooled_chunks.astype(jnp.bfloat16),
                            preferred_element_type=jnp.float32)       # [B, H]

    # ---- finalize: mean, MLP, fc, sigmoid --------------------------
    @pl.when(k == pl.num_programs(0) - 1)
    def _():
        counts = jnp.maximum(cnt_ref[...], 1.0)                       # [B, 1]
        pooled = acc_ref[...] * pl.reciprocal(counts, approx=True)    # [B, H]

        # MLP (dropout = identity at inference)
        b1 = sp_ref[1:2, :M2]                                         # [1, 2M]
        h1 = jnp.maximum(
            jnp.dot(pooled.astype(jnp.bfloat16), w1_ref[...],
                    preferred_element_type=jnp.float32) + b1, 0.0)    # [B, 2M]
        b2 = sp_ref[2:3, :M]                                          # [1, M]
        h2 = jnp.maximum(
            jnp.dot(h1.astype(jnp.bfloat16), w2_ref[...],
                    preferred_element_type=jnp.float32) + b2, 0.0)    # [B, M]

        # fc (out_features = 1): VPU multiply + XLU lane reduction
        wf_row = sp_ref[3:4, :M]                                      # [1, M]
        bf = sp_ref[4:5, 0:1]                                         # [1, 1]
        logit = jnp.sum(h2 * wf_row, axis=-1, keepdims=True) + bf     # [B, 1]
        risk = jax.nn.sigmoid(logit)                                  # [B, 1]

        # Lane-dense store: broadcast across 128 lanes; wrapper slices col 0.
        out_ref[...] = jnp.broadcast_to(risk, out_ref.shape)


def acu_head(cls_emb_bf16, step_row, params, batch_pad, csum_tile):
    """Run the gridded Pallas classifier-head kernel. Returns [B_pad, 128]."""
    wp, w1, w2, sp = params
    csum_pad, H = cls_emb_bf16.shape
    M2 = w1.shape[1]
    M = w2.shape[1]
    P = sp.shape[1]
    tc = csum_tile
    assert csum_pad % tc == 0
    grid = (csum_pad // tc,)

    return pl.pallas_call(
        acu_head_kernel,
        out_shape=jax.ShapeDtypeStruct((batch_pad, 128), jnp.float32),
        grid_spec=pltpu.PrefetchScalarGridSpec(
            num_scalar_prefetch=0,
            grid=grid,
            in_specs=[
                pl.BlockSpec((1, tc), lambda k: (0, k)),    # step_chunks (tiled)
                pl.BlockSpec((tc, H), lambda k: (k, 0)),    # cls_emb (tiled, pipelined)
                pl.BlockSpec((H, H), lambda k: (0, 0)),     # wp (resident)
                pl.BlockSpec((H, M2), lambda k: (0, 0)),    # w1 (resident)
                pl.BlockSpec((M2, M), lambda k: (0, 0)),    # w2 (resident)
                pl.BlockSpec((8, P), lambda k: (0, 0)),     # packed small params
            ],
            out_specs=pl.BlockSpec((batch_pad, 128), lambda k: (0, 0)),
            scratch_shapes=[
                pltpu.VMEM((batch_pad, H), jnp.float32),    # scatter-sum accumulator
                pltpu.VMEM((batch_pad, 1), jnp.float32),    # chunk counts
            ],
        ),
        compiler_params=pltpu.CompilerParams(
            dimension_semantics=("arbitrary",),             # Csum is a reduction axis
            vmem_limit_bytes=32 * 1024 * 1024,              # safe on v5e/v6e/v7x
        ),
    )(step_row, cls_emb_bf16, wp, w1, w2, sp)


# ----------------------------------------------------------------------------
# Glue: deterministic parameter construction + BERT embedding stand-in.
# ----------------------------------------------------------------------------
def make_params(key, vocab, max_len, hidden, mlp):
    ks = jax.random.split(key, 10)
    s = 0.05
    tok_table = s * jax.random.normal(ks[0], (vocab, hidden), jnp.float32)
    typ_table = s * jax.random.normal(ks[1], (2, hidden), jnp.float32)
    pos_table = s * jax.random.normal(ks[2], (max_len, hidden), jnp.float32)

    # Large weight matrices shipped to the kernel as bf16 (f32 MXU accumulation).
    wp = (s * jax.random.normal(ks[3], (hidden, hidden), jnp.float32)).astype(jnp.bfloat16)
    w1 = (s * jax.random.normal(ks[4], (hidden, 2 * mlp), jnp.float32)).astype(jnp.bfloat16)
    w2 = (s * jax.random.normal(ks[5], (2 * mlp, mlp), jnp.float32)).astype(jnp.bfloat16)

    # Small f32 params packed into ONE lane-padded buffer -> a single VMEM DMA.
    bp = jnp.zeros((hidden,), jnp.float32)
    b1 = 0.01 * jnp.ones((2 * mlp,), jnp.float32)
    b2 = 0.01 * jnp.ones((mlp,), jnp.float32)
    wf = s * jax.random.normal(ks[6], (mlp,), jnp.float32)
    bf = jnp.zeros((), jnp.float32)

    P = _round_up(max(hidden, 2 * mlp), 128)
    sp = jnp.zeros((8, P), jnp.float32)
    sp = sp.at[0, :hidden].set(bp)        # pooler bias
    sp = sp.at[1, :2 * mlp].set(b1)       # MLP layer-1 bias
    sp = sp.at[2, :mlp].set(b2)           # MLP layer-2 bias
    sp = sp.at[3, :mlp].set(wf)           # fc weight as a row vector
    sp = sp.at[4, 0].set(bf)              # fc bias scalar

    embed_tables = (tok_table, typ_table, pos_table)
    kernel_params = (wp, w1, w2, sp)
    return embed_tables, kernel_params


def bert_cls_embeddings(input_ids, token_type_ids, embed_tables):
    """BERT backbone stand-in (embedding lookup only)."""
    # TODO(synk): the real BertModel encoder (multi-layer self-attention) is an
    # external pretrained submodule; only the embedding layer is modeled here.
    tok_table, typ_table, pos_table = embed_tables
    L = input_ids.shape[1]
    seq = tok_table[input_ids] + typ_table[token_type_ids] + pos_table[None, :L, :]
    return seq[:, 0, :]                                   # [Csum, H] CLS hidden


def acu_classifier_forward(input_ids, token_type_ids, attention_mask, chunks,
                           embed_tables, kernel_params):
    """Mirrors ACUClassifier.forward (indipendent_chunks=False, eval mode).

    input_ids / token_type_ids / attention_mask : [sum_chunks, max_len] int32
    chunks                                      : [batch] int32  (chunks per note)
    returns risk                                : [batch] float32
    """
    Csum, _ = input_ids.shape
    B = chunks.shape[0]
    H = embed_tables[0].shape[1]

    cls_emb = bert_cls_embeddings(input_ids, token_type_ids, embed_tables)  # [Csum, H]
    del attention_mask  # only consumed inside the real BERT / non-CLS pooling

    # chunk -> note assignment (Csum int32s); one-hot + counts rebuilt in-kernel.
    # NOTE: total_repeat_length silently pads/truncates if sum(chunks) != Csum.
    step = jnp.repeat(jnp.arange(B, dtype=jnp.int32), chunks, total_repeat_length=Csum)

    # --- wrapper-side padding: full sublane/lane tiles (layout plumbing) -----
    if Csum <= CSUM_TILE:
        csum_pad = max(16, _round_up(Csum, 16))   # bf16 sublane multiple
        tc = csum_pad
    else:
        tc = CSUM_TILE
        csum_pad = _round_up(Csum, tc)
    b_pad = max(8, _round_up(B, 8))               # f32 sublane multiple

    cls_pad = jnp.zeros((csum_pad, H), jnp.bfloat16).at[:Csum].set(
        cls_emb.astype(jnp.bfloat16))
    step_pad = jnp.full((1, csum_pad), -1, jnp.int32).at[0, :Csum].set(step)

    out = acu_head(cls_pad, step_pad, kernel_params, b_pad, tc)
    return out[:B, 0]   # risk[:, 0] in the PyTorch module


# ----------------------------------------------------------------------------
# Pure-JAX f32 reference (same bf16-rounded weights) for a tolerance check.
# ----------------------------------------------------------------------------
def reference_forward(input_ids, token_type_ids, chunks, embed_tables, kernel_params):
    wp, w1, w2, sp = kernel_params
    H = wp.shape[0]
    M2 = w1.shape[1]
    M = w2.shape[1]
    Csum = input_ids.shape[0]
    B = chunks.shape[0]

    cls_emb = bert_cls_embeddings(input_ids, token_type_ids, embed_tables)
    cls_emb = cls_emb.astype(jnp.bfloat16).astype(jnp.float32)
    bp = sp[0, :H]; b1 = sp[1, :M2]; b2 = sp[2, :M]
    wf = sp[3, :M]; bf = sp[4, 0]

    pooled_chunks = jnp.tanh(cls_emb @ wp.astype(jnp.float32) + bp)
    step = jnp.repeat(jnp.arange(B, dtype=jnp.int32), chunks, total_repeat_length=Csum)
    onehot = (step[None, :] == jnp.arange(B)[:, None]).astype(jnp.float32)
    counts = jnp.maximum(onehot.sum(-1, keepdims=True), 1.0)
    pooled = (onehot @ pooled_chunks) / counts
    h1 = jnp.maximum(pooled @ w1.astype(jnp.float32) + b1, 0.0)
    h2 = jnp.maximum(h1 @ w2.astype(jnp.float32) + b2, 0.0)
    logit = h2 @ wf + bf
    return jax.nn.sigmoid(logit)


if __name__ == "__main__":
    # Small, deterministic configuration consistent with the module.
    VOCAB = 64
    MAX_LEN = 8          # seq length per chunk
    HIDDEN = 32          # bert.config.hidden_size
    MLP = 32             # intermediate_mlp_size
    BATCH = 2            # number of notes
    chunks = jnp.array([2, 1], dtype=jnp.int32)   # chunks per note
    CSUM = int(chunks.sum())                       # total chunks = 3

    key = jax.random.PRNGKey(0)
    k_param, k_ids, k_typ = jax.random.split(key, 3)

    embed_tables, kernel_params = make_params(k_param, VOCAB, MAX_LEN, HIDDEN, MLP)

    input_ids = jax.random.randint(k_ids, (CSUM, MAX_LEN), 0, VOCAB, jnp.int32)
    token_type_ids = jax.random.randint(k_typ, (CSUM, MAX_LEN), 0, 2, jnp.int32)
    attention_mask = jnp.ones((CSUM, MAX_LEN), jnp.int32)

    risk = acu_classifier_forward(input_ids, token_type_ids, attention_mask,
                                  chunks, embed_tables, kernel_params)
    risk = jax.block_until_ready(risk)
    assert risk.shape == (BATCH,)
    assert bool(jnp.all((risk >= 0.0) & (risk <= 1.0)))

    # Tolerance check against the f32 reference (bf16 MXU + approx reciprocal drift).
    risk_ref = reference_forward(input_ids, token_type_ids, chunks,
                                 embed_tables, kernel_params)
    assert bool(jnp.max(jnp.abs(risk - risk_ref)) < 3e-2)

    print("KERNEL_OK")
</pallas_src>

<mosaic_0001>
module attributes {stable_mosaic.version = 11 : i64} {
  func.func @acu_head_kernel(%arg0: i32, %arg1: memref<1x16xi32, #tpu.memory_space<vmem>>, %arg2: memref<16x32xbf16, #tpu.memory_space<vmem>>, %arg3: memref<32x32xbf16, #tpu.memory_space<vmem>>, %arg4: memref<32x64xbf16, #tpu.memory_space<vmem>>, %arg5: memref<64x32xbf16, #tpu.memory_space<vmem>>, %arg6: memref<8x128xf32, #tpu.memory_space<vmem>>, %arg7: memref<8x128xf32, #tpu.memory_space<vmem>>, %arg8: memref<8x32xf32, #tpu.memory_space<vmem>>, %arg9: memref<8x1xf32, #tpu.memory_space<vmem>>) attributes {dimension_semantics = [#tpu.dimension_semantics<arbitrary>], iteration_bounds = array<i64: 1>, scalar_prefetch = 0 : i64, scratch_operands = 2 : i64, tpu.core_type = #tpu.core_type<tc>, window_params = [{transform_indices = @transform_0, window_bounds = array<i64: 1, 16>}, {transform_indices = @transform_1, window_bounds = array<i64: 16, 32>}, {pipeline_mode = #tpu.pipeline_mode<synchronous>, transform_indices = @transform_2, window_bounds = array<i64: 32, 32>}, {pipeline_mode = #tpu.pipeline_mode<synchronous>, transform_indices = @transform_3, window_bounds = array<i64: 32, 64>}, {pipeline_mode = #tpu.pipeline_mode<synchronous>, transform_indices = @transform_4, window_bounds = array<i64: 64, 32>}, {pipeline_mode = #tpu.pipeline_mode<synchronous>, transform_indices = @transform_5, window_bounds = array<i64: 8, 128>}, {pipeline_mode = #tpu.pipeline_mode<synchronous>, transform_indices = @transform_6, window_bounds = array<i64: 8, 128>}]} {
    %c0_i32 = arith.constant 0 : i32
    %0 = arith.cmpi eq, %arg0, %c0_i32 : i32
    %1 = arith.extui %0 : i1 to i32
    %c0_i32_0 = arith.constant 0 : i32
    %2 = arith.cmpi ne, %1, %c0_i32_0 : i32
    scf.if %2 {
      %cst_20 = arith.constant 0.000000e+00 : f32
      %32 = vector.broadcast %cst_20 : f32 to vector<8x32xf32>
      %c0_21 = arith.constant 0 : index
      %c0_22 = arith.constant 0 : index
      %33 = vector.load %arg8[%c0_21, %c0_22] : memref<8x32xf32, #tpu.memory_space<vmem>>, vector<8x32xf32>
      tpu.vector_store %arg8[%c0_21, %c0_22], %32 {strides = array<i32>} : memref<8x32xf32, #tpu.memory_space<vmem>>, vector<8x32xf32>,
      %cst_23 = arith.constant 0.000000e+00 : f32
      %34 = vector.broadcast %cst_23 : f32 to vector<8x1xf32>
      %c0_24 = arith.constant 0 : index
      %c0_25 = arith.constant 0 : index
      %35 = vector.load %arg9[%c0_24, %c0_25] : memref<8x1xf32, #tpu.memory_space<vmem>>, vector<8x1xf32>
      tpu.vector_store %arg9[%c0_24, %c0_25], %34 {strides = array<i32>} : memref<8x1xf32, #tpu.memory_space<vmem>>, vector<8x1xf32>,
    } else {
    }
    %c0 = arith.constant 0 : index
    %c0_1 = arith.constant 0 : index
    %3 = vector.load %arg6[%c0, %c0_1] : memref<8x128xf32, #tpu.memory_space<vmem>>, vector<1x32xf32>
    %c0_2 = arith.constant 0 : index
    %c0_3 = arith.constant 0 : index
    %4 = vector.load %arg2[%c0_2, %c0_3] : memref<16x32xbf16, #tpu.memory_space<vmem>>, vector<16x32xbf16>
    %c0_4 = arith.constant 0 : index
    %c0_5 = arith.constant 0 : index
    %5 = vector.load %arg3[%c0_4, %c0_5] : memref<32x32xbf16, #tpu.memory_space<vmem>>, vector<32x32xbf16>
    %cst = arith.constant dense<0.000000e+00> : vector<16x32xf32>
    %6 = tpu.matmul %4, %5, %cst {dimension_numbers = #tpu.dot_dimension_numbers<[1], [0], [0], [1], [0, 0, 1, 1], [], []>} : vector<16x32xbf16>, vector<32x32xbf16>, vector<16x32xf32> -> vector<16x32xf32>
    %7 = vector.broadcast %3 : vector<1x32xf32> to vector<16x32xf32>
    %8 = arith.addf %6, %7 : vector<16x32xf32>
    %9 = math.tanh %8 : vector<16x32xf32>
    %c0_6 = arith.constant 0 : index
    %c0_7 = arith.constant 0 : index
    %10 = vector.load %arg1[%c0_6, %c0_7] : memref<1x16xi32, #tpu.memory_space<vmem>>, vector<1x16xi32>
    %11 = tpu.iota {dimensions = array<i32: 0>} : vector<8x16xi32>
    %12 = vector.broadcast %10 : vector<1x16xi32> to vector<8x16xi32>
    %13 = arith.cmpi eq, %12, %11 : vector<8x16xi32>
    %c0_8 = arith.constant 0 : index
    %c0_9 = arith.constant 0 : index
    %14 = vector.load %arg9[%c0_8, %c0_9] : memref<8x1xf32, #tpu.memory_space<vmem>>, vector<8x1xf32>
    %15 = arith.extui %13 : vector<8x16xi1> to vector<8x16xi32>
    %16 = arith.sitofp %15 : vector<8x16xi32> to vector<8x16xf32>
    %cst_10 = arith.constant dense<0.000000e+00> : vector<8xf32>
    %17 = vector.multi_reduction <add>, %16, %cst_10 [1] : vector<8x16xf32> to vector<8xf32>
    %18 = vector.shape_cast %17 : vector<8xf32> to vector<8x1xf32>
    %19 = arith.addf %14, %18 : vector<8x1xf32>
    %c0_11 = arith.constant 0 : index
    %c0_12 = arith.constant 0 : index
    %20 = vector.load %arg9[%c0_11, %c0_12] : memref<8x1xf32, #tpu.memory_space<vmem>>, vector<8x1xf32>
    tpu.vector_store %arg9[%c0_11, %c0_12], %19 {strides = array<i32>} : memref<8x1xf32, #tpu.memory_space<vmem>>, vector<8x1xf32>,
    %c0_13 = arith.constant 0 : index
    %c0_14 = arith.constant 0 : index
    %21 = vector.load %arg8[%c0_13, %c0_14] : memref<8x32xf32, #tpu.memory_space<vmem>>, vector<8x32xf32>
    %22 = arith.extui %13 : vector<8x16xi1> to vector<8x16xi32>
    %23 = arith.sitofp %22 : vector<8x16xi32> to vector<8x16xf32>
    %24 = arith.truncf %23 : vector<8x16xf32> to vector<8x16xbf16>
    %25 = arith.truncf %9 : vector<16x32xf32> to vector<16x32xbf16>
    %cst_15 = arith.constant dense<0.000000e+00> : vector<8x32xf32>
    %26 = tpu.matmul %24, %25, %cst_15 {dimension_numbers = #tpu.dot_dimension_numbers<[1], [0], [0], [1], [0, 0, 1, 1], [], []>} : vector<8x16xbf16>, vector<16x32xbf16>, vector<8x32xf32> -> vector<8x32xf32>
    %27 = arith.addf %21, %26 : vector<8x32xf32>
    %c0_16 = arith.constant 0 : index
    %c0_17 = arith.constant 0 : index
    %28 = vector.load %arg8[%c0_16, %c0_17] : memref<8x32xf32, #tpu.memory_space<vmem>>, vector<8x32xf32>
    tpu.vector_store %arg8[%c0_16, %c0_17], %27 {strides = array<i32>} : memref<8x32xf32, #tpu.memory_space<vmem>>, vector<8x32xf32>,
    %c0_i32_18 = arith.constant 0 : i32
    %29 = arith.cmpi eq, %arg0, %c0_i32_18 : i32
    %30 = arith.extui %29 : i1 to i32
    %c0_i32_19 = arith.constant 0 : i32
    %31 = arith.cmpi ne, %30, %c0_i32_19 : i32
    scf.if %31 {
      %c0_20 = arith.constant 0 : index
      %c0_21 = arith.constant 0 : index
      %32 = vector.load %arg9[%c0_20, %c0_21] : memref<8x1xf32, #tpu.memory_space<vmem>>, vector<8x1xf32>
      %cst_22 = arith.constant 1.000000e+00 : f32
      %33 = vector.broadcast %cst_22 : f32 to vector<8x1xf32>
      %34 = arith.maximumf %32, %33 : vector<8x1xf32>
      %c0_23 = arith.constant 0 : index
      %c0_24 = arith.constant 0 : index
      %35 = vector.load %arg8[%c0_23, %c0_24] : memref<8x32xf32, #tpu.memory_space<vmem>>, vector<8x32xf32>
      %36 = tpu.reciprocal %34 {approx = true} : vector<8x1xf32> -> vector<8x1xf32>
      %37 = vector.broadcast %36 : vector<8x1xf32> to vector<8x32xf32>
      %38 = arith.mulf %35, %37 : vector<8x32xf32>
      %c1 = arith.constant 1 : index
      %c0_25 = arith.constant 0 : index
      %39 = vector.load %arg6[%c1, %c0_25] : memref<8x128xf32, #tpu.memory_space<vmem>>, vector<1x64xf32>
      %40 = arith.truncf %38 : vector<8x32xf32> to vector<8x32xbf16>
      %c0_26 = arith.constant 0 : index
      %c0_27 = arith.constant 0 : index
      %41 = vector.load %arg4[%c0_26, %c0_27] : memref<32x64xbf16, #tpu.memory_space<vmem>>, vector<32x64xbf16>
      %cst_28 = arith.constant dense<0.000000e+00> : vector<8x64xf32>
      %42 = tpu.matmul %40, %41, %cst_28 {dimension_numbers = #tpu.dot_dimension_numbers<[1], [0], [0], [1], [0, 0, 1, 1], [], []>} : vector<8x32xbf16>, vector<32x64xbf16>, vector<8x64xf32> -> vector<8x64xf32>
      %43 = vector.broadcast %39 : vector<1x64xf32> to vector<8x64xf32>
      %44 = arith.addf %42, %43 : vector<8x64xf32>
      %cst_29 = arith.constant 0.000000e+00 : f32
      %45 = vector.broadcast %cst_29 : f32 to vector<8x64xf32>
      %46 = arith.maximumf %44, %45 : vector<8x64xf32>
      %c2 = arith.constant 2 : index
      %c0_30 = arith.constant 0 : index
      %47 = vector.load %arg6[%c2, %c0_30] : memref<8x128xf32, #tpu.memory_space<vmem>>, vector<1x32xf32>
      %48 = arith.truncf %46 : vector<8x64xf32> to vector<8x64xbf16>
      %c0_31 = arith.constant 0 : index
      %c0_32 = arith.constant 0 : index
      %49 = vector.load %arg5[%c0_31, %c0_32] : memref<64x32xbf16, #tpu.memory_space<vmem>>, vector<64x32xbf16>
      %cst_33 = arith.constant dense<0.000000e+00> : vector<8x32xf32>
      %50 = tpu.matmul %48, %49, %cst_33 {dimension_numbers = #tpu.dot_dimension_numbers<[1], [0], [0], [1], [0, 0, 1, 1], [], []>} : vector<8x64xbf16>, vector<64x32xbf16>, vector<8x32xf32> -> vector<8x32xf32>
      %51 = vector.broadcast %47 : vector<1x32xf32> to vector<8x32xf32>
      %52 = arith.addf %50, %51 : vector<8x32xf32>
      %cst_34 = arith.constant 0.000000e+00 : f32
      %53 = vector.broadcast %cst_34 : f32 to vector<8x32xf32>
      %54 = arith.maximumf %52, %53 : vector<8x32xf32>
      %c3 = arith.constant 3 : index
      %c0_35 = arith.constant 0 : index
      %55 = vector.load %arg6[%c3, %c0_35] : memref<8x128xf32, #tpu.memory_space<vmem>>, vector<1x32xf32>
      %c4 = arith.constant 4 : index
      %c0_36 = arith.constant 0 : index
      %56 = vector.load %arg6[%c4, %c0_36] : memref<8x128xf32, #tpu.memory_space<vmem>>, vector<1x1xf32>
      %57 = vector.broadcast %55 : vector<1x32xf32> to vector<8x32xf32>
      %58 = arith.mulf %54, %57 : vector<8x32xf32>
      %cst_37 = arith.constant dense<0.000000e+00> : vector<8xf32>
      %59 = vector.multi_reduction <add>, %58, %cst_37 [1] : vector<8x32xf32> to vector<8xf32>
      %60 = vector.shape_cast %59 : vector<8xf32> to vector<8x1xf32>
      %61 = vector.broadcast %56 : vector<1x1xf32> to vector<8x1xf32>
      %62 = arith.addf %60, %61 : vector<8x1xf32>
      %63 = arith.negf %62 : vector<8x1xf32>
      %64 = math.exp %63 : vector<8x1xf32>
      %cst_38 = arith.constant 1.000000e+00 : f32
      %65 = vector.broadcast %cst_38 : f32 to vector<8x1xf32>
      %66 = arith.addf %65, %64 : vector<8x1xf32>
      %67 = arith.divf %65, %66 : vector<8x1xf32>
      %68 = vector.shape_cast %67 : vector<8x1xf32> to vector<8x1xf32>
      %69 = vector.broadcast %68 : vector<8x1xf32> to vector<8x128xf32>
      %c0_39 = arith.constant 0 : index
      %c0_40 = arith.constant 0 : index
      %70 = vector.load %arg7[%c0_39, %c0_40] : memref<8x128xf32, #tpu.memory_space<vmem>>, vector<8x128xf32>
      tpu.vector_store %arg7[%c0_39, %c0_40], %69 {strides = array<i32>} : memref<8x128xf32, #tpu.memory_space<vmem>>, vector<8x128xf32>,
    } else {
    }
    return
  }
  func.func @transform_0(%arg0: i32) -> (i32, i32) {
    %c0_i32 = arith.constant 0 : i32
    %c0_i32_0 = arith.constant 0 : i32
    return %c0_i32, %arg0 : i32, i32
  }
  func.func @transform_1(%arg0: i32) -> (i32, i32) {
    %c0_i32 = arith.constant 0 : i32
    %c0_i32_0 = arith.constant 0 : i32
    return %arg0, %c0_i32 : i32, i32
  }
  func.func @transform_2(%arg0: i32) -> (i32, i32) {
    %c0_i32 = arith.constant 0 : i32
    %c0_i32_0 = arith.constant 0 : i32
    %c0_i32_1 = arith.constant 0 : i32
    return %c0_i32, %c0_i32_0 : i32, i32
  }
  func.func @transform_3(%arg0: i32) -> (i32, i32) {
    %c0_i32 = arith.constant 0 : i32
    %c0_i32_0 = arith.constant 0 : i32
    %c0_i32_1 = arith.constant 0 : i32
    return %c0_i32, %c0_i32_0 : i32, i32
  }
  func.func @transform_4(%arg0: i32) -> (i32, i32) {
    %c0_i32 = arith.constant 0 : i32
    %c0_i32_0 = arith.constant 0 : i32
    %c0_i32_1 = arith.constant 0 : i32
    return %c0_i32, %c0_i32_0 : i32, i32
  }
  func.func @transform_5(%arg0: i32) -> (i32, i32) {
    %c0_i32 = arith.constant 0 : i32
    %c0_i32_0 = arith.constant 0 : i32
    %c0_i32_1 = arith.constant 0 : i32
    return %c0_i32, %c0_i32_0 : i32, i32
  }
  func.func @transform_6(%arg0: i32) -> (i32, i32) {
    %c0_i32 = arith.constant 0 : i32
    %c0_i32_0 = arith.constant 0 : i32
    %c0_i32_1 = arith.constant 0 : i32
    return %c0_i32, %c0_i32_0 : i32, i32
  }
}

</mosaic_0001>

<llo_original>
// kernel: tpu_custom_call.1
$region0: #{tpu_custom_call.1}
  #allocation0 [shape = 'u32[]', space=smem, size = 0x4, offset = 0x4, fixed_abs, tag = 'smem constant byte address 0x4 - core index']
  #allocation1 [shape = 'u32[72,128]{1,0:T(1,128)}', space=vmem, size = 0x9000, scoped, tag = 'internal scratch']
  #allocation2 [shape = 'f32[8,32]{1,0:T(8,128)}', space=vmem, size = 0x1000, scoped, tag = 'scratch operand']
  #allocation3 [shape = 'f32[8,1]{1,0:T(8,128)}', space=vmem, size = 0x1000, scoped, tag = 'scratch operand']
  %s0 = inlined_call_operand.hbm [shape: s32[1,16], index: 0, kind: input, shape index: {}]
  %s1 = inlined_call_operand.vmem [shape: bf16[16,32], index: 1, kind: input, shape index: {}]
  %s2 = inlined_call_operand.vmem [shape: bf16[32,32], index: 2, kind: input, shape index: {}]
  %s3 = inlined_call_operand.vmem [shape: bf16[32,64], index: 3, kind: input, shape index: {}]
  %s4 = inlined_call_operand.vmem [shape: bf16[64,32], index: 4, kind: input, shape index: {}]
  %s5 = inlined_call_operand.vmem [shape: f32[8,128], index: 5, kind: input, shape index: {}]
  %s6 = inlined_call_operand.hbm [shape: f32[8,128], index: 6, kind: output, shape index: {}]
  %s7 = sld [smem:[#allocation0]]
  $region46: #{tpu_custom_call.1} parent=0
    _
  %s9 = ssub.s32 1, %s7
  %s10 = scalar_select 0, %s9, %s7
  $region1: #{tpu_custom_call.1} parent=0
    #allocation4 [shape = 'u8[512]{0}', space=vmem, size = 0x400, scoped, tag = 'input window, operand 0, single buffered']
    #allocation5 [shape = 's32[1]{0}', space=sflag, size = 0x4, scoped, tag = 'scoped memory for tpu_custom_call.1']
    #allocation6 [shape = 's32[1]{0}', space=sflag, size = 0x4, scoped, tag = 'scoped memory for tpu_custom_call.1']
    #allocation7 [shape = 'u8[4096]{0}', space=vmem, size = 0x1000, scoped, tag = 'output window, operand 0, single buffered']
    %11 = vsyncpa [#allocation5], 0
    %12 = vsyncpa [#allocation6], 0
    // Predicated region
    $region2: #{tpu_custom_call.1} parent=1 // pred_check
      _
    $region3: #{tpu_custom_call.1} parent=1 // pred_check_branch
      %14 = sbr.rel (0) target = $region5
    $region4: #{tpu_custom_call.1} parent=1 // pred_region
      %16 = vsyncadd [#allocation5], 0
      %s18 = sshll.u32 %s0, 4
      %s19 = int_to_ptr.hbm [resolvable:$true] %s18
      %s20 = sshll.u32 [#allocation4], 4
      %s21 = int_to_ptr.vmem [resolvable:$true] %s20
      %23 = dma.hbm_to_vmem [thread:$0]  %s19, 16, %s21, [#allocation5]
    $region5: #{tpu_custom_call.1} parent=1 // pred_fallthru
      _
    // Predicated region
    $region6: #{tpu_custom_call.1} parent=1 // pred_check
      _
    $region7: #{tpu_custom_call.1} parent=1 // pred_check_branch
      %25 = sbr.rel (0) target = $region9
    $region8: #{tpu_custom_call.1} parent=1 // pred_region
      _
    $region9: #{tpu_custom_call.1} parent=1 // pred_fallthru
      _
    // Predicated region
    $region10: #{tpu_custom_call.1} parent=1 // pred_check
      _
    $region11: #{tpu_custom_call.1} parent=1 // pred_check_branch
      %27 = sbr.rel (0) target = $region13
    $region12: #{tpu_custom_call.1} parent=1 // pred_region
      _
    $region13: #{tpu_custom_call.1} parent=1 // pred_fallthru
      _
    // Predicated region
    $region14: #{tpu_custom_call.1} parent=1 // pred_check
      _
    $region15: #{tpu_custom_call.1} parent=1 // pred_check_branch
      %29 = sbr.rel (0) target = $region17
    $region16: #{tpu_custom_call.1} parent=1 // pred_region
      _
    $region17: #{tpu_custom_call.1} parent=1 // pred_fallthru
      _
    // Predicated region
    $region18: #{tpu_custom_call.1} parent=1 // pred_check
      _
    $region19: #{tpu_custom_call.1} parent=1 // pred_check_branch
      %31 = sbr.rel (0) target = $region21
    $region20: #{tpu_custom_call.1} parent=1 // pred_region
      _
    $region21: #{tpu_custom_call.1} parent=1 // pred_fallthru
      _
    // Predicated region
    $region22: #{tpu_custom_call.1} parent=1 // pred_check
      _
    $region23: #{tpu_custom_call.1} parent=1 // pred_check_branch
      %33 = sbr.rel (0) target = $region25
    $region24: #{tpu_custom_call.1} parent=1 // pred_region
      _
    $region25: #{tpu_custom_call.1} parent=1 // pred_fallthru
      _
    // Predicated region
    $region26: #{tpu_custom_call.1} parent=1 // pred_check
      _
    $region27: #{tpu_custom_call.1} parent=1 // pred_check_branch
      %35 = sbr.rel (0) target = $region29
    $region28: #{tpu_custom_call.1} parent=1 // pred_region
      %37 = dma.done [#allocation5], 16
    $region29: #{tpu_custom_call.1} parent=1 // pred_fallthru
      _
    %p39 = scmp.eq.s32.totalorder 0, 0
    // Predicated region
    $region30: #{tpu_custom_call.1} parent=1 // pred_check
      %p40 = pneg %p39
    $region31: #{tpu_custom_call.1} parent=1 // pred_check_branch
      %42 = sbr.rel (%p40) target = $region33
    $region32: #{tpu_custom_call.1} parent=1 // pred_region
      %vm43 = vcmask 261120
      %44 = vst.msk [vmem:[#allocation2] sm:$0xff] %vm43, 0.0
      %vm45 = vcmask 7168
      %46 = vst.msk [vmem:[#allocation3] sm:$0xff] %vm45, 0.0
    $region33: #{tpu_custom_call.1} parent=1 // pred_fallthru
      _
    %v47 = vld [vmem:[%s5] sm:$0x1]
    %v48 = vld [vmem:[%s1] sm:$0xf]
    %v49 = vld [vmem:[%s1 + $0x4] sm:$0xf]
    %v50 = vld [vmem:[%s2] sm:$0xf]
    %v51 = vld [vmem:[%s2 + $0x4] sm:$0xf]
    %v52 = vld [vmem:[%s2 + $0x8] sm:$0xf]
    %v53 = vld [vmem:[%s2 + $0xc] sm:$0xf]
    %v54 = vperm.slane %v47, 0
    %v57 = vunpack.c.l.b16 %v48
    %v58 = vunpack.c.l.b16 %v49
    %v59 = vpack.c.b16 %v58, %v57
    %v64 = vunpack.c.l.b16 %v50
    %v65 = vunpack.c.l.b16 %v51
    %v66 = vunpack.c.l.b16 %v52
    %v67 = vunpack.c.l.b16 %v53
    %v68 = vpack.c.b16 %v65, %v64
    %v69 = vpack.c.b16 %v67, %v66
    %vm72 = vcmask 261120
    %v74 = vsel %vm72, %v59, 0
    %76 = vmatpush.bf16.msra.mxu0 0
    %77 = vmatpush.bf16.msra.mxu0 0
    %78 = vmatpush.bf16.msra.mxu0 0
    %79 = vmatpush.bf16.msra.mxu0 0
    %80 = vmatpush.bf16.msra.mxu0 0
    %81 = vmatpush.bf16.msra.mxu0 0
    %82 = vmatpush.bf16.msra.mxu0 %v69
    %83 = vmatpush.bf16.msra.mxu0 %v68
    %84 = vmatmul.bf16.gmra.mxu0 %v74
    %v85 = vpop.f32.mrf.mxu0
    %v86 = vadd.f32 %v54, %v85
    %v87 = vpop.f32.mrf.mxu0
    %v88 = vadd.f32 %v54, %v87
    %89 = vdwg.mxu0
    %v90 = vtanh.pop %v86
    %v91 = vtanh.pop %v88
    %v92 = vld [vmem:[#allocation4] sm:$0x1]
    %v93 = vlaneseq
    %v94 = vshrl.u32 %v93, 7
    %v95 = vperm.slane %v92, 0
    %vm96 = vcmp.eq.s32.totalorder %v95, %v94
    %v97 = vld [vmem:[#allocation3] sm:$0xff]
    %v98 = vsel %vm96, 1, 0
    %v99 = vcvt.s32.f32 %v98
    %vm100 = vcmask 130048
    %v101 = vsel %vm100, %v99, 0.0
    %102 = vadd.xlane.f32.xlu0 %v101
    %v103 = vpop.xlane.xlu0 %102
    %v104 = vadd.f32 %v97, %v103
    %vm105 = vcmask 7168
    %106 = vst.msk [vmem:[#allocation3] sm:$0xff] %vm105, %v104
    %v107 = vld [vmem:[#allocation2] sm:$0xff]
    %v108 = vpack.c.bf16 %v99, %v99
    %v109 = vpack.c.bf16 %v91, %v90
    %v111 = vsel %vm100, %v108, 0
    %113 = vmatpush.bf16.msra.mxu0 0
    %114 = vmatpush.bf16.msra.mxu0 0
    %115 = vmatpush.bf16.msra.mxu0 0
    %116 = vmatpush.bf16.msra.mxu0 0
    %117 = vmatpush.bf16.msra.mxu0 0
    %118 = vmatpush.bf16.msra.mxu0 0
    %119 = vmatpush.bf16.msra.mxu0 0
    %120 = vmatpush.bf16.msra.mxu0 %v109
    %121 = vmatmul.bf16.gmra.mxu0 %v111
    %v122 = vpop.f32.mrf.mxu0
    %v123 = vadd.f32 0.0, %v122
    %v124 = vpop.f32.mrf.mxu0
    %125 = vdwg.mxu0
    %v126 = vadd.f32 %v107, %v123
    %127 = vst.msk [vmem:[#allocation2] sm:$0xff] %vm72, %v126
    // Predicated region
    $region34: #{tpu_custom_call.1} parent=1 // pred_check
      %p128 = pneg %p39
    $region35: #{tpu_custom_call.1} parent=1 // pred_check_branch
      %130 = sbr.rel (%p128) target = $region37
    $region36: #{tpu_custom_call.1} parent=1 // pred_region
      %v131 = vld [vmem:[#allocation3] sm:$0xff]
      %v132 = vmax.f32 %v131, 1.0
      %v133 = vld [vmem:[#allocation2] sm:$0xff]
      %v134 = vrcp.pop %v132
      %136 = vset.pattern.permute.xlu0 0
      %137 = vperm.xlu0 %136, %v134
      %v138 = vpop.permute.xlu0 %137
      %v140 = vmul.f32 %v133, %v138
      %v141 = vld [vmem:[%s5 + $0x1] sm:$0x1]
      %v142 = vpack.c.bf16 %v140, %v140
      %v143 = vld [vmem:[%s3] sm:$0xf]
      %v144 = vld [vmem:[%s3 + $0x4] sm:$0xf]
      %v145 = vld [vmem:[%s3 + $0x8] sm:$0xf]
      %v146 = vld [vmem:[%s3 + $0xc] sm:$0xf]
      %v147 = vperm.slane %v141, 0
      %v152 = vunpack.c.l.b16 %v143
      %v153 = vunpack.c.l.b16 %v144
      %v154 = vunpack.c.l.b16 %v145
      %v155 = vunpack.c.l.b16 %v146
      %v156 = vpack.c.b16 %v153, %v152
      %v157 = vpack.c.b16 %v155, %v154
      %v161 = vsel %vm72, %v142, 0
      %163 = vmatpush.bf16.msra.mxu0 0
      %164 = vmatpush.bf16.msra.mxu0 0
      %165 = vmatpush.bf16.msra.mxu0 0
      %166 = vmatpush.bf16.msra.mxu0 0
      %167 = vmatpush.bf16.msra.mxu0 0
      %168 = vmatpush.bf16.msra.mxu0 0
      %169 = vmatpush.bf16.msra.mxu0 %v157
      %170 = vmatpush.bf16.msra.mxu0 %v156
      %171 = vmatmul.bf16.gmra.mxu0 %v161
      %v172 = vpop.f32.mrf.mxu0
      %v173 = vadd.f32 %v147, %v172
      %v174 = vpop.f32.mrf.mxu0
      %175 = vdwg.mxu0
      %v176 = vmax.f32 %v173, 0.0
      %v177 = vld [vmem:[%s5 + $0x2] sm:$0x1]
      %v178 = vpack.c.bf16 %v176, %v176
      %v179 = vld [vmem:[%s4] sm:$0xf]
      %v180 = vld [vmem:[%s4 + $0x4] sm:$0xf]
      %v181 = vld [vmem:[%s4 + $0x8] sm:$0xf]
      %v182 = vld [vmem:[%s4 + $0xc] sm:$0xf]
      %v183 = vld [vmem:[%s4 + $0x10] sm:$0xf]
      %v184 = vld [vmem:[%s4 + $0x14] sm:$0xf]
      %v185 = vld [vmem:[%s4 + $0x18] sm:$0xf]
      %v186 = vld [vmem:[%s4 + $0x1c] sm:$0xf]
      %v187 = vperm.slane %v177, 0
      %v196 = vunpack.c.l.b16 %v179
      %v197 = vunpack.c.l.b16 %v180
      %v198 = vunpack.c.l.b16 %v181
      %v199 = vunpack.c.l.b16 %v182
      %v200 = vunpack.c.l.b16 %v183
      %v201 = vunpack.c.l.b16 %v184
      %v202 = vunpack.c.l.b16 %v185
      %v203 = vunpack.c.l.b16 %v186
      %v204 = vpack.c.b16 %v197, %v196
      %v205 = vpack.c.b16 %v199, %v198
      %v206 = vpack.c.b16 %v201, %v200
      %v207 = vpack.c.b16 %v203, %v202
      %vm212 = vcmask 523264
      %v214 = vsel %vm212, %v178, 0
      %216 = vmatpush.bf16.msra.mxu0 0
      %217 = vmatpush.bf16.msra.mxu0 0
      %218 = vmatpush.bf16.msra.mxu0 0
      %219 = vmatpush.bf16.msra.mxu0 0
      %220 = vmatpush.bf16.msra.mxu0 %v207
      %221 = vmatpush.bf16.msra.mxu0 %v206
      %222 = vmatpush.bf16.msra.mxu0 %v205
      %223 = vmatpush.bf16.msra.mxu0 %v204
      %224 = vmatmul.bf16.gmra.mxu0 %v214
      %v225 = vpop.f32.mrf.mxu0
      %v226 = vadd.f32 %v187, %v225
      %v227 = vpop.f32.mrf.mxu0
      %228 = vdwg.mxu0
      %v229 = vmax.f32 %v226, 0.0
      %v230 = vld [vmem:[%s5 + $0x3] sm:$0x1]
      %v231 = vld [vmem:[%s5 + $0x4] sm:$0x1]
      %v232 = vperm.slane %v230, 0
      %v233 = vmul.f32 %v229, %v232
      %v234 = vsel %vm72, %v233, 0.0
      %235 = vadd.xlane.f32.xlu0 %v234
      %v236 = vpop.xlane.xlu0 %235
      %v237 = vperm.slane %v231, 0
      %v238 = vadd.f32 %v236, %v237
      %v239 = vxor.u32 %v238, 2147483648
      %v240 = vmul.f32 %v239, 1.442695
      %v241 = vpow.pop %v240
      %v242 = vadd.f32 %v241, 1.0
      %v243 = vrcp.pop %v242
      %v244 = vmul.f32 %v242, %v243
      %v245 = vsub.f32 1.0, %v244
      %v246 = vmul.f32 %v243, %v245
      %v247 = vadd.f32 %v243, %v246
      %vm248 = vweird.f32 %v242
      %vm249 = vweird.f32 %v243
      %vm250 = vmor %vm248, %vm249
      %v251 = vsel %vm250, %v243, %v247
      %v252 = vand.u32 2147483647, %v242
      %vm253 = vcmp.eq.f32.partialorder %v252, 8.507059e+37
      %v254 = vand.u32 %v242, 2147483648
      %v255 = vor.u32 1.1754944e-38, %v254
      %v256 = vsel %vm253, %v255, %v251
      %v257 = vmul.f32 1.0, %v256
      %259 = vset.pattern.permute.xlu0 0
      %260 = vperm.xlu0 %259, %v257
      %v261 = vpop.permute.xlu0 %260
      %263 = vst [vmem:[#allocation7] sm:$0xff] %v261
    $region37: #{tpu_custom_call.1} parent=1 // pred_fallthru
      _
    // Predicated region
    $region38: #{tpu_custom_call.1} parent=1 // pred_check
      _
    $region39: #{tpu_custom_call.1} parent=1 // pred_check_branch
      %265 = sbr.rel (0) target = $region41
    $region40: #{tpu_custom_call.1} parent=1 // pred_region
      %267 = vsyncadd [#allocation6], 0
      %s269 = sshll.u32 [#allocation7], 4
      %s270 = int_to_ptr.vmem [resolvable:$true] %s269
      %s271 = sshll.u32 %s6, 4
      %s272 = int_to_ptr.hbm [resolvable:$true] %s271
      %274 = dma.vmem_to_hbm [thread:$0]  %s270, 128, %s272, [#allocation6]
    $region41: #{tpu_custom_call.1} parent=1 // pred_fallthru
      _
    // Predicated region
    $region42: #{tpu_custom_call.1} parent=1 // pred_check
      _
    $region43: #{tpu_custom_call.1} parent=1 // pred_check_branch
      %276 = sbr.rel (0) target = $region45
    $region44: #{tpu_custom_call.1} parent=1 // pred_region
      %278 = dma.done [#allocation6], 128
    $region45: #{tpu_custom_call.1} parent=1 // pred_fallthru
      _
    %279 = vsyncpa [#allocation5], 1
    %280 = vsyncpa [#allocation6], 1

</llo_original>
